<compile_context>
chip_gen: v6e
topology: v6e:2x2x1
jax: 0.10.0
libtpu: 0.0.40
codegen_flags: <defaults>
</compile_context>

<pallas_src>
import jax
import jax.numpy as jnp
from jax.experimental import pallas as pl
from jax.experimental.pallas import tpu as pltpu

ROW_ALIGN = 32   # batch-tile row alignment (covers f32/bf16/int8 sublane packing)


def _round_up(x, m):
    return (x + m - 1) // m * m


def mlp_kernel(x_ref, w1_ref, w2_ref, b1_ref, b2_ref, o_ref):
    # fc1: (tb, D) @ (D, H) on the MXU; bf16 operands, f32 accumulation.
    x = x_ref[...].astype(w1_ref.dtype)
    h = jnp.dot(x, w1_ref[...], preferred_element_type=jnp.float32)
    h = jnp.maximum(h + b1_ref[...], 0.0)            # f32 bias + ReLU on the VPU
    # fc2: (tb, H) @ (H, A); bf16 operands, f32 accumulation.
    out = jnp.dot(h.astype(w2_ref.dtype), w2_ref[...],
                  preferred_element_type=jnp.float32)
    o_ref[...] = (out + b2_ref[...]).astype(o_ref.dtype)


def prepare_params(w1, b1, w2, b2, matmul_dtype=jnp.bfloat16):
    """One-time parameter prep (hoisted out of the step loop)."""
    return {
        "w1": jnp.asarray(w1, matmul_dtype),                 # (D_in, H)
        "b1": jnp.asarray(b1, jnp.float32).reshape(1, -1),   # (1, H)
        "w2": jnp.asarray(w2, matmul_dtype),                 # (H, A)
        "b2": jnp.asarray(b2, jnp.float32).reshape(1, -1),   # (1, A)
    }


def _xla_forward(state, params):
    """Plain-XLA fast path for tiny batches (same bf16-operand numerics)."""
    xb = state.astype(params["w1"].dtype)
    h = jnp.dot(xb, params["w1"], preferred_element_type=jnp.float32) + params["b1"]
    h = jnp.maximum(h, 0.0)
    return (jnp.dot(h.astype(params["w2"].dtype), params["w2"],
                    preferred_element_type=jnp.float32) + params["b2"])


def network_forward(state, params, *, tile_b=2048, min_pallas_batch=None,
                    min_split_batch=1024):
    """Pallas equivalent of Network.forward: fc2(relu(fc1(state)))."""
    w1, b1, w2, b2 = params["w1"], params["b1"], params["w2"], params["b2"]
    B, D_in = state.shape
    H = w1.shape[1]
    A = w2.shape[1]
    assert w1.shape[0] == D_in and w2.shape[0] == H
    assert b1.shape == (1, H) and b2.shape == (1, A)

    # Tiny batches: pallas_call launch + grid overhead dominates; let XLA fuse.
    if min_pallas_batch is not None and B < min_pallas_batch:
        return _xla_forward(state, params)

    # ---- batch tiling (no padding of any dim in HBM) ----
    if B <= tile_b:
        tile = B                                    # single full-array block
    else:
        tile = _round_up(tile_b, ROW_ALIGN)
    # v7x megacore: make sure large batches produce >= 2 parallel tiles.
    if B >= min_split_batch and pl.cdiv(B, tile) < 2:
        tile = _round_up(pl.cdiv(B, 2), ROW_ALIGN)
    grid = (pl.cdiv(B, tile),)

    flops = 2 * B * (D_in * H + H * A)
    bytes_accessed = (B * D_in * state.dtype.itemsize
                      + w1.size * w1.dtype.itemsize
                      + w2.size * w2.dtype.itemsize
                      + (b1.size + b2.size) * 4
                      + B * A * 4)

    return pl.pallas_call(
        mlp_kernel,
        out_shape=jax.ShapeDtypeStruct((B, A), jnp.float32),
        grid=grid,
        in_specs=[
            pl.BlockSpec((tile, D_in), lambda i: (i, 0)),   # x: streamed per tile
            pl.BlockSpec((D_in, H), lambda i: (0, 0)),      # w1: VMEM resident
            pl.BlockSpec((H, A), lambda i: (0, 0)),         # w2: VMEM resident
            pl.BlockSpec((1, H), lambda i: (0, 0)),         # b1: VMEM resident
            pl.BlockSpec((1, A), lambda i: (0, 0)),         # b2: VMEM resident
        ],
        out_specs=pl.BlockSpec((tile, A), lambda i: (i, 0)),
        compiler_params=pltpu.CompilerParams(
            dimension_semantics=("parallel",)),
        cost_estimate=pl.CostEstimate(
            flops=flops, transcendentals=0, bytes_accessed=bytes_accessed),
    )(state, w1, w2, b1, b2)


def init_params(key, input_dims, hidden, no_of_actions):
    """Deterministic init matching nn.Linear's U(-1/sqrt(fan_in), 1/sqrt(fan_in))."""
    k1, k2, k3, k4 = jax.random.split(key, 4)
    bound1 = 1.0 / jnp.sqrt(input_dims)
    bound2 = 1.0 / jnp.sqrt(hidden)
    w1 = jax.random.uniform(k1, (input_dims, hidden), jnp.float32, -bound1, bound1)
    b1 = jax.random.uniform(k2, (1, hidden), jnp.float32, -bound1, bound1)
    w2 = jax.random.uniform(k3, (hidden, no_of_actions), jnp.float32, -bound2, bound2)
    b2 = jax.random.uniform(k4, (1, no_of_actions), jnp.float32, -bound2, bound2)
    return w1, b1, w2, b2


if __name__ == "__main__":
    key = jax.random.PRNGKey(0)
    k_params, k_state = jax.random.split(key)

    # Shapes consistent with the module: input_dims=(8,), hidden=128 (fixed by
    # the module), no_of_actions=4, batch=2.
    batch, input_dims, hidden, no_of_actions = 2, 8, 128, 4

    w1, b1, w2, b2 = init_params(k_params, input_dims, hidden, no_of_actions)
    params = prepare_params(w1, b1, w2, b2)   # one-time (hoisted) weight prep

    def ref_bf16(x):
        # Same bf16-operand / f32-accumulate path as the kernel (tight check).
        xb = x.astype(jnp.bfloat16)
        h = jnp.maximum(jnp.dot(xb, w1.astype(jnp.bfloat16),
                                preferred_element_type=jnp.float32) + b1, 0.0)
        return jnp.dot(h.astype(jnp.bfloat16), w2.astype(jnp.bfloat16),
                       preferred_element_type=jnp.float32) + b2

    def ref_f32(x):
        # Original f32 torch-equivalent forward (loose sanity check).
        return jnp.maximum(x @ w1 + b1, 0.0) @ w2 + b2

    # 1) module-sized case (batch=2) run through the Pallas kernel.
    state = jax.random.normal(k_state, (batch, input_dims), jnp.float32)
    actions = jax.block_until_ready(network_forward(state, params))
    assert actions.shape == (batch, no_of_actions)
    assert jnp.allclose(actions, ref_bf16(state), atol=1e-4, rtol=1e-4)
    assert jnp.allclose(actions, ref_f32(state), atol=5e-2, rtol=5e-2)

    # 2) multi-tile streamed path (grid of 3 parallel batch tiles).
    state_big = jax.random.normal(jax.random.PRNGKey(1), (384, input_dims),
                                  jnp.float32)
    out_big = jax.block_until_ready(network_forward(state_big, params, tile_b=128))
    assert out_big.shape == (384, no_of_actions)
    assert jnp.allclose(out_big, ref_bf16(state_big), atol=1e-4, rtol=1e-4)

    # 3) batch not a multiple of the tile (partial last block).
    state_odd = jax.random.normal(jax.random.PRNGKey(2), (300, input_dims),
                                  jnp.float32)
    out_odd = jax.block_until_ready(network_forward(state_odd, params, tile_b=128))
    assert out_odd.shape == (300, no_of_actions)
    assert jnp.allclose(out_odd, ref_bf16(state_odd), atol=1e-4, rtol=1e-4)

    # 4) tiny-batch fast path (bypasses Pallas, plain XLA fusion).
    out_fast = jax.block_until_ready(
        network_forward(state, params, min_pallas_batch=128))
    assert out_fast.shape == (batch, no_of_actions)
    assert jnp.allclose(out_fast, ref_bf16(state), atol=1e-4, rtol=1e-4)

    print("KERNEL_OK")
</pallas_src>

<mosaic_0001>
module attributes {stable_mosaic.version = 11 : i64} {
  func.func @mlp_kernel(%arg0: i32, %arg1: memref<2x8xf32, #tpu.memory_space<vmem>>, %arg2: memref<8x128xbf16, #tpu.memory_space<vmem>>, %arg3: memref<128x4xbf16, #tpu.memory_space<vmem>>, %arg4: memref<1x128xf32, #tpu.memory_space<vmem>>, %arg5: memref<1x4xf32, #tpu.memory_space<vmem>>, %arg6: memref<2x4xf32, #tpu.memory_space<vmem>>) attributes {dimension_semantics = [#tpu.dimension_semantics<parallel>], iteration_bounds = array<i64: 1>, scalar_prefetch = 0 : i64, scratch_operands = 0 : i64, tpu.core_type = #tpu.core_type<tc>, window_params = [{transform_indices = @transform_0, window_bounds = array<i64: 2, 8>}, {pipeline_mode = #tpu.pipeline_mode<synchronous>, transform_indices = @transform_1, window_bounds = array<i64: 8, 128>}, {pipeline_mode = #tpu.pipeline_mode<synchronous>, transform_indices = @transform_2, window_bounds = array<i64: 128, 4>}, {pipeline_mode = #tpu.pipeline_mode<synchronous>, transform_indices = @transform_3, window_bounds = array<i64: 1, 128>}, {pipeline_mode = #tpu.pipeline_mode<synchronous>, transform_indices = @transform_4, window_bounds = array<i64: 1, 4>}, {transform_indices = @transform_5, window_bounds = array<i64: 2, 4>}]} {
    %c0 = arith.constant 0 : index
    %c0_0 = arith.constant 0 : index
    %0 = vector.load %arg1[%c0, %c0_0] : memref<2x8xf32, #tpu.memory_space<vmem>>, vector<2x8xf32>
    %1 = arith.truncf %0 : vector<2x8xf32> to vector<2x8xbf16>
    %c0_1 = arith.constant 0 : index
    %c0_2 = arith.constant 0 : index
    %2 = vector.load %arg2[%c0_1, %c0_2] : memref<8x128xbf16, #tpu.memory_space<vmem>>, vector<8x128xbf16>
    %cst = arith.constant dense<0.000000e+00> : vector<2x128xf32>
    %3 = tpu.matmul %1, %2, %cst {dimension_numbers = #tpu.dot_dimension_numbers<[1], [0], [0], [1], [0, 0, 1, 1], [], []>} : vector<2x8xbf16>, vector<8x128xbf16>, vector<2x128xf32> -> vector<2x128xf32>
    %c0_3 = arith.constant 0 : index
    %c0_4 = arith.constant 0 : index
    %4 = vector.load %arg4[%c0_3, %c0_4] : memref<1x128xf32, #tpu.memory_space<vmem>>, vector<1x128xf32>
    %5 = vector.broadcast %4 : vector<1x128xf32> to vector<2x128xf32>
    %6 = arith.addf %3, %5 : vector<2x128xf32>
    %cst_5 = arith.constant 0.000000e+00 : f32
    %7 = vector.broadcast %cst_5 : f32 to vector<2x128xf32>
    %8 = arith.maximumf %6, %7 : vector<2x128xf32>
    %9 = arith.truncf %8 : vector<2x128xf32> to vector<2x128xbf16>
    %c0_6 = arith.constant 0 : index
    %c0_7 = arith.constant 0 : index
    %10 = vector.load %arg3[%c0_6, %c0_7] : memref<128x4xbf16, #tpu.memory_space<vmem>>, vector<128x4xbf16>
    %cst_8 = arith.constant dense<0.000000e+00> : vector<2x4xf32>
    %11 = tpu.matmul %9, %10, %cst_8 {dimension_numbers = #tpu.dot_dimension_numbers<[1], [0], [0], [1], [0, 0, 1, 1], [], []>} : vector<2x128xbf16>, vector<128x4xbf16>, vector<2x4xf32> -> vector<2x4xf32>
    %c0_9 = arith.constant 0 : index
    %c0_10 = arith.constant 0 : index
    %12 = vector.load %arg5[%c0_9, %c0_10] : memref<1x4xf32, #tpu.memory_space<vmem>>, vector<1x4xf32>
    %13 = vector.broadcast %12 : vector<1x4xf32> to vector<2x4xf32>
    %14 = arith.addf %11, %13 : vector<2x4xf32>
    %c0_11 = arith.constant 0 : index
    %c0_12 = arith.constant 0 : index
    %15 = vector.load %arg6[%c0_11, %c0_12] : memref<2x4xf32, #tpu.memory_space<vmem>>, vector<2x4xf32>
    tpu.vector_store %arg6[%c0_11, %c0_12], %14 {strides = array<i32>} : memref<2x4xf32, #tpu.memory_space<vmem>>, vector<2x4xf32>,
    return
  }
  func.func @transform_0(%arg0: i32) -> (i32, i32) {
    %c0_i32 = arith.constant 0 : i32
    %c0_i32_0 = arith.constant 0 : i32
    return %arg0, %c0_i32 : i32, i32
  }
  func.func @transform_1(%arg0: i32) -> (i32, i32) {
    %c0_i32 = arith.constant 0 : i32
    %c0_i32_0 = arith.constant 0 : i32
    %c0_i32_1 = arith.constant 0 : i32
    return %c0_i32, %c0_i32_0 : i32, i32
  }
  func.func @transform_2(%arg0: i32) -> (i32, i32) {
    %c0_i32 = arith.constant 0 : i32
    %c0_i32_0 = arith.constant 0 : i32
    %c0_i32_1 = arith.constant 0 : i32
    return %c0_i32, %c0_i32_0 : i32, i32
  }
  func.func @transform_3(%arg0: i32) -> (i32, i32) {
    %c0_i32 = arith.constant 0 : i32
    %c0_i32_0 = arith.constant 0 : i32
    %c0_i32_1 = arith.constant 0 : i32
    return %c0_i32, %c0_i32_0 : i32, i32
  }
  func.func @transform_4(%arg0: i32) -> (i32, i32) {
    %c0_i32 = arith.constant 0 : i32
    %c0_i32_0 = arith.constant 0 : i32
    %c0_i32_1 = arith.constant 0 : i32
    return %c0_i32, %c0_i32_0 : i32, i32
  }
  func.func @transform_5(%arg0: i32) -> (i32, i32) {
    %c0_i32 = arith.constant 0 : i32
    %c0_i32_0 = arith.constant 0 : i32
    return %arg0, %c0_i32 : i32, i32
  }
}

</mosaic_0001>

<llo_original>
// kernel: tpu_custom_call.1
$region0: #{tpu_custom_call.1}
  #allocation0 [shape = 'u32[]', space=smem, size = 0x4, offset = 0x4, fixed_abs, tag = 'smem constant byte address 0x4 - core index']
  #allocation1 [shape = 'u32[144,128]{1,0:T(1,128)}', space=vmem, size = 0x12000, scoped, tag = 'internal scratch']
  %s0 = inlined_call_operand.vmem [shape: f32[2,8], index: 0, kind: input, shape index: {}]
  %s1 = inlined_call_operand.vmem [shape: bf16[8,128], index: 1, kind: input, shape index: {}]
  %s2 = inlined_call_operand.vmem [shape: bf16[128,4], index: 2, kind: input, shape index: {}]
  %s3 = inlined_call_operand.vmem [shape: f32[1,128], index: 3, kind: input, shape index: {}]
  %s4 = inlined_call_operand.vmem [shape: f32[1,4], index: 4, kind: input, shape index: {}]
  %s5 = inlined_call_operand.hbm [shape: f32[2,4], index: 5, kind: output, shape index: {}]
  %s6 = sld [smem:[#allocation0]]
  $region30: #{tpu_custom_call.1} parent=0
    _
  %s8 = ssub.s32 1, %s6
  %s9 = scalar_select 0, %s8, %s6
  $region1: #{tpu_custom_call.1} parent=0
    #allocation2 [shape = 'u8[1024]{0}', space=vmem, size = 0x400, scoped, tag = 'output window, operand 0, single buffered']
    #allocation3 [shape = 's32[1]{0}', space=sflag, size = 0x4, scoped, tag = 'scoped memory for tpu_custom_call.1']
    %10 = vsyncpa [#allocation3], 0
    // Predicated region
    $region2: #{tpu_custom_call.1} parent=1 // pred_check
      _
    $region3: #{tpu_custom_call.1} parent=1 // pred_check_branch
      %12 = sbr.rel (0) target = $region5
    $region4: #{tpu_custom_call.1} parent=1 // pred_region
      _
    $region5: #{tpu_custom_call.1} parent=1 // pred_fallthru
      _
    // Predicated region
    $region6: #{tpu_custom_call.1} parent=1 // pred_check
      _
    $region7: #{tpu_custom_call.1} parent=1 // pred_check_branch
      %14 = sbr.rel (0) target = $region9
    $region8: #{tpu_custom_call.1} parent=1 // pred_region
      _
    $region9: #{tpu_custom_call.1} parent=1 // pred_fallthru
      _
    // Predicated region
    $region10: #{tpu_custom_call.1} parent=1 // pred_check
      _
    $region11: #{tpu_custom_call.1} parent=1 // pred_check_branch
      %16 = sbr.rel (0) target = $region13
    $region12: #{tpu_custom_call.1} parent=1 // pred_region
      _
    $region13: #{tpu_custom_call.1} parent=1 // pred_fallthru
      _
    // Predicated region
    $region14: #{tpu_custom_call.1} parent=1 // pred_check
      _
    $region15: #{tpu_custom_call.1} parent=1 // pred_check_branch
      %18 = sbr.rel (0) target = $region17
    $region16: #{tpu_custom_call.1} parent=1 // pred_region
      _
    $region17: #{tpu_custom_call.1} parent=1 // pred_fallthru
      _
    // Predicated region
    $region18: #{tpu_custom_call.1} parent=1 // pred_check
      _
    $region19: #{tpu_custom_call.1} parent=1 // pred_check_branch
      %20 = sbr.rel (0) target = $region21
    $region20: #{tpu_custom_call.1} parent=1 // pred_region
      _
    $region21: #{tpu_custom_call.1} parent=1 // pred_fallthru
      _
    %v22 = vld [vmem:[%s0] sm:$0x3]
    %v23 = vpack.c.bf16 %v22, %v22
    %v24 = vld [vmem:[%s1] sm:$0xf]
    %v25 = vld [vmem:[%s3] sm:$0x1]
    %v27 = vlaneseq
    %v28 = vshrl.u32 %v27, 7
    %v29 = vsub.s32 0, %v28
    %v30 = vrot.slane %v25, %v29
    %vm32 = vcmask 64512
    %v34 = vsel %vm32, %v23, 0
    %vm36 = vcmask 1043456
    %v38 = vsel %vm36, %v24, 0
    %40 = vmatprep.subr.bf16.mxu0 0
    %41 = vmatpush1.bf16.msra.mxu0 0
    %42 = vmatprep.subr.bf16.mxu0 0
    %43 = vmatpush1.bf16.msra.mxu0 0
    %44 = vmatprep.subr.bf16.mxu0 0
    %45 = vmatpush1.bf16.msra.mxu0 0
    %46 = vmatprep.subr.bf16.mxu0 0
    %47 = vmatpush1.bf16.msra.mxu0 0
    %48 = vmatprep.subr.bf16.mxu0 0
    %49 = vmatpush1.bf16.msra.mxu0 0
    %50 = vmatprep.subr.bf16.mxu0 0
    %51 = vmatpush1.bf16.msra.mxu0 0
    %52 = vmatprep.subr.bf16.mxu0 0
    %53 = vmatpush1.bf16.msra.mxu0 0
    %54 = vmatprep.subr.bf16.mxu0 0
    %55 = vmatpush1.bf16.msra.mxu0 %v38
    %56 = vmatprep.subr.bf16.mxu0 0
    %57 = vmatpush2.bf16.msra.mxu0 0
    %58 = vmatprep.subr.bf16.mxu0 0
    %59 = vmatpush2.bf16.msra.mxu0 0
    %60 = vmatprep.subr.bf16.mxu0 0
    %61 = vmatpush2.bf16.msra.mxu0 0
    %62 = vmatprep.subr.bf16.mxu0 0
    %63 = vmatpush2.bf16.msra.mxu0 0
    %64 = vmatprep.subr.bf16.mxu0 0
    %65 = vmatpush2.bf16.msra.mxu0 0
    %66 = vmatprep.subr.bf16.mxu0 0
    %67 = vmatpush2.bf16.msra.mxu0 0
    %68 = vmatprep.subr.bf16.mxu0 0
    %69 = vmatpush2.bf16.msra.mxu0 0
    %70 = vmatprep.subr.bf16.mxu0 0
    %71 = vmatpush2.bf16.msra.mxu0 0
    %72 = vmatprep.mubr.bf16.mxu0 0
    %73 = vmatmul.mubr.bf16.gmra.mxu0 %v34
    %v74 = vpop.f32.mrf.mxu0
    %v75 = vadd.f32 %v30, %v74
    %v76 = vpop.f32.mrf.mxu0
    %v77 = vpop.f32.mrf.mxu0
    %v78 = vpop.f32.mrf.mxu0
    %79 = vdwg.mxu0
    %v80 = vmax.f32 %v75, 0.0
    %v81 = vpack.c.bf16 %v80, %v80
    %v82 = vld [vmem:[%s2] sm:$0xf]
    %v83 = vld [vmem:[%s2 + $0x4] sm:$0xf]
    %v84 = vld [vmem:[%s2 + $0x8] sm:$0xf]
    %v85 = vld [vmem:[%s2 + $0xc] sm:$0xf]
    %v86 = vld [vmem:[%s2 + $0x10] sm:$0xf]
    %v87 = vld [vmem:[%s2 + $0x14] sm:$0xf]
    %v88 = vld [vmem:[%s2 + $0x18] sm:$0xf]
    %v89 = vld [vmem:[%s2 + $0x1c] sm:$0xf]
    %v90 = vld [vmem:[%s2 + $0x20] sm:$0xf]
    %v91 = vld [vmem:[%s2 + $0x24] sm:$0xf]
    %v92 = vld [vmem:[%s2 + $0x28] sm:$0xf]
    %v93 = vld [vmem:[%s2 + $0x2c] sm:$0xf]
    %v94 = vld [vmem:[%s2 + $0x30] sm:$0xf]
    %v95 = vld [vmem:[%s2 + $0x34] sm:$0xf]
    %v96 = vld [vmem:[%s2 + $0x38] sm:$0xf]
    %v97 = vld [vmem:[%s2 + $0x3c] sm:$0xf]
    %v98 = vld [vmem:[%s4] sm:$0x1]
    %v100 = vlaneseq
    %v101 = vshrl.u32 %v100, 7
    %v102 = vsub.s32 0, %v101
    %v103 = vrot.slane %v98, %v102
    %v121 = vunpack.c.l.b16 %v82
    %v122 = vunpack.c.l.b16 %v83
    %v123 = vunpack.c.l.b16 %v84
    %v124 = vunpack.c.l.b16 %v85
    %v125 = vunpack.c.l.b16 %v86
    %v126 = vunpack.c.l.b16 %v87
    %v127 = vunpack.c.l.b16 %v88
    %v128 = vunpack.c.l.b16 %v89
    %v129 = vunpack.c.l.b16 %v90
    %v130 = vunpack.c.l.b16 %v91
    %v131 = vunpack.c.l.b16 %v92
    %v132 = vunpack.c.l.b16 %v93
    %v133 = vunpack.c.l.b16 %v94
    %v134 = vunpack.c.l.b16 %v95
    %v135 = vunpack.c.l.b16 %v96
    %v136 = vunpack.c.l.b16 %v97
    %v137 = vpack.c.b16 %v122, %v121
    %v138 = vpack.c.b16 %v124, %v123
    %v139 = vpack.c.b16 %v126, %v125
    %v140 = vpack.c.b16 %v128, %v127
    %v141 = vpack.c.b16 %v130, %v129
    %v142 = vpack.c.b16 %v132, %v131
    %v143 = vpack.c.b16 %v134, %v133
    %v144 = vpack.c.b16 %v136, %v135
    %153 = vmatprep.subr.bf16.mxu0 0
    %154 = vmatpush1.bf16.msra.mxu0 %v144
    %155 = vmatprep.subr.bf16.mxu0 0
    %156 = vmatpush1.bf16.msra.mxu0 %v143
    %157 = vmatprep.subr.bf16.mxu0 0
    %158 = vmatpush1.bf16.msra.mxu0 %v142
    %159 = vmatprep.subr.bf16.mxu0 0
    %160 = vmatpush1.bf16.msra.mxu0 %v141
    %161 = vmatprep.subr.bf16.mxu0 0
    %162 = vmatpush1.bf16.msra.mxu0 %v140
    %163 = vmatprep.subr.bf16.mxu0 0
    %164 = vmatpush1.bf16.msra.mxu0 %v139
    %165 = vmatprep.subr.bf16.mxu0 0
    %166 = vmatpush1.bf16.msra.mxu0 %v138
    %167 = vmatprep.subr.bf16.mxu0 0
    %168 = vmatpush1.bf16.msra.mxu0 %v137
    %169 = vmatprep.subr.bf16.mxu0 0
    %170 = vmatpush2.bf16.msra.mxu0 0
    %171 = vmatprep.subr.bf16.mxu0 0
    %172 = vmatpush2.bf16.msra.mxu0 0
    %173 = vmatprep.subr.bf16.mxu0 0
    %174 = vmatpush2.bf16.msra.mxu0 0
    %175 = vmatprep.subr.bf16.mxu0 0
    %176 = vmatpush2.bf16.msra.mxu0 0
    %177 = vmatprep.subr.bf16.mxu0 0
    %178 = vmatpush2.bf16.msra.mxu0 0
    %179 = vmatprep.subr.bf16.mxu0 0
    %180 = vmatpush2.bf16.msra.mxu0 0
    %181 = vmatprep.subr.bf16.mxu0 0
    %182 = vmatpush2.bf16.msra.mxu0 0
    %183 = vmatprep.subr.bf16.mxu0 0
    %184 = vmatpush2.bf16.msra.mxu0 0
    %185 = vmatprep.mubr.bf16.mxu0 0
    %186 = vmatmul.mubr.bf16.gmra.mxu0 %v81
    %v187 = vpop.f32.mrf.mxu0
    %v188 = vadd.f32 %v103, %v187
    %v189 = vpop.f32.mrf.mxu0
    %v190 = vpop.f32.mrf.mxu0
    %v191 = vpop.f32.mrf.mxu0
    %192 = vdwg.mxu0
    %vm193 = vcmask 25600
    %194 = vst.msk [vmem:[#allocation2] sm:$0x3] %vm193, %v188
    // Predicated region
    $region22: #{tpu_custom_call.1} parent=1 // pred_check
      _
    $region23: #{tpu_custom_call.1} parent=1 // pred_check_branch
      %196 = sbr.rel (0) target = $region25
    $region24: #{tpu_custom_call.1} parent=1 // pred_region
      %s198 = ssub.s32 32, 32
      %199 = vsyncadd [#allocation3], %s198
      %s201 = sshll.u32 [#allocation2], 4
      %s202 = int_to_ptr.vmem [resolvable:$true] %s201
      %204 = dma.vmem_to_hbm [thread:$0]  %s202, 32, %s5, [#allocation3]
    $region25: #{tpu_custom_call.1} parent=1 // pred_fallthru
      _
    // Predicated region
    $region26: #{tpu_custom_call.1} parent=1 // pred_check
      _
    $region27: #{tpu_custom_call.1} parent=1 // pred_check_branch
      %206 = sbr.rel (0) target = $region29
    $region28: #{tpu_custom_call.1} parent=1 // pred_region
      %207 = dma.done [#allocation3], 32
    $region29: #{tpu_custom_call.1} parent=1 // pred_fallthru
      _
    %208 = vsyncpa [#allocation3], 1

</llo_original>
